<compile_context>
chip_gen: v5e
topology: v5e:2x2
jax: 0.10.0
libtpu: 0.0.40
codegen_flags: <defaults>
</compile_context>

<pallas_src>
import jax
import jax.numpy as jnp
from jax.experimental import pallas as pl
from jax.experimental.pallas import tpu as pltpu


def mlp_kernel(x_ref, w1_ref, b1_ref, w2_ref, b2_ref, o_ref):
    # First linear (MXU, bf16 in / f32 acc) + bias + ReLU (VPU).
    h = jnp.dot(x_ref[...], w1_ref[...], preferred_element_type=jnp.float32)
    h = jnp.maximum(h + b1_ref[...], 0.0)          # b1 is [1, c_hidden], broadcasts over rows
    # Second linear: cast the activated intermediate back to the MXU compute dtype.
    y = jnp.dot(h.astype(w2_ref.dtype), w2_ref[...], preferred_element_type=jnp.float32)
    o_ref[...] = (y + b2_ref[...]).astype(o_ref.dtype)   # b2 is [1, c_out_pad]


def mlp_forward(x, w1, b1, w2, b2, *, tm=512, compute_dtype=jnp.bfloat16):
    """x: [N, c_in]; w1: [c_in, c_hidden]; b1: [1, c_hidden];
       w2: [c_hidden, c_out]; b2: [1, c_out] -> [N, c_out] (same dtype as x)."""
    N, c_in = x.shape
    c_hidden = w1.shape[1]
    c_out = w2.shape[1]
    lane = 128
    row_align = 16  # bf16 sublane packing (also a multiple of the f32 8-sublane tile)

    # Row tile: round to row_align, never bigger than the (aligned) problem.
    tm = max(row_align, pl.cdiv(int(tm), row_align) * row_align)
    tm = min(tm, pl.cdiv(N, row_align) * row_align)
    n_pad = pl.cdiv(N, tm) * tm
    # Lane-dense output: pad c_out (and W2 / b2 columns) to a multiple of 128.
    c_out_pad = pl.cdiv(c_out, lane) * lane

    cd = compute_dtype
    xp = jnp.zeros((n_pad, c_in), cd).at[:N, :].set(x.astype(cd))
    w1c = w1.astype(cd)
    b1c = b1.astype(jnp.float32)
    w2p = jnp.zeros((c_hidden, c_out_pad), cd).at[:, :c_out].set(w2.astype(cd))
    b2p = jnp.zeros((1, c_out_pad), jnp.float32).at[:, :c_out].set(b2.astype(jnp.float32))

    grid = (n_pad // tm,)
    flops = 2 * n_pad * (c_in * c_hidden + c_hidden * c_out_pad)
    bytes_accessed = (
        n_pad * c_in * 2                 # x (bf16)
        + c_in * c_hidden * 2            # w1 (bf16)
        + c_hidden * c_out_pad * 2       # w2 (bf16)
        + (c_hidden + c_out_pad) * 4     # biases (f32)
        + n_pad * c_out_pad * 4          # output (f32)
    )

    out = pl.pallas_call(
        mlp_kernel,
        out_shape=jax.ShapeDtypeStruct((n_pad, c_out_pad), jnp.float32),
        grid_spec=pltpu.PrefetchScalarGridSpec(
            num_scalar_prefetch=0,
            grid=grid,
            in_specs=[
                pl.BlockSpec((tm, c_in), lambda i: (i, 0)),            # x: tiled over rows
                pl.BlockSpec((c_in, c_hidden), lambda i: (0, 0)),      # W1: resident
                pl.BlockSpec((1, c_hidden), lambda i: (0, 0)),         # b1: resident
                pl.BlockSpec((c_hidden, c_out_pad), lambda i: (0, 0)), # W2: resident
                pl.BlockSpec((1, c_out_pad), lambda i: (0, 0)),        # b2: resident
            ],
            out_specs=pl.BlockSpec((tm, c_out_pad), lambda i: (i, 0)),
        ),
        compiler_params=pltpu.CompilerParams(
            dimension_semantics=("parallel",),   # independent row tiles (megacore-shardable)
        ),
        cost_estimate=pl.CostEstimate(
            flops=flops, transcendentals=0, bytes_accessed=bytes_accessed),
    )(xp, w1c, b1c, w2p, b2p)

    return out[:N, :c_out].astype(x.dtype)


def init_linear_params(key, fan_in, fan_out, dtype=jnp.float32):
    """Deterministic init mimicking nn.Linear default (uniform +/- 1/sqrt(fan_in)).
    Returned weight is [fan_in, fan_out] (already transposed for x @ W)."""
    kw, kb = jax.random.split(key)
    bound = 1.0 / (fan_in ** 0.5)
    w = jax.random.uniform(kw, (fan_in, fan_out), dtype, minval=-bound, maxval=bound)
    b = jax.random.uniform(kb, (1, fan_out), dtype, minval=-bound, maxval=bound)
    return w, b


def _reference(x, w1, b1, w2, b2, compute_dtype=jnp.bfloat16):
    """Pure-JAX reference mirroring the kernel's bf16-in / f32-acc numerics."""
    cd = compute_dtype
    xr = x.astype(cd).astype(jnp.float32)
    w1r = w1.astype(cd).astype(jnp.float32)
    w2r = w2.astype(cd).astype(jnp.float32)
    h = jnp.maximum(xr @ w1r + b1, 0.0)
    h = h.astype(cd).astype(jnp.float32)
    return h @ w2r + b2


if __name__ == "__main__":
    # Small shapes consistent with the module: N nodes, c_in -> c_hidden -> c_out
    N, c_in, c_hidden, c_out = 8, 16, 32, 4

    key = jax.random.PRNGKey(0)
    kx, k1, k2 = jax.random.split(key, 3)

    x = jax.random.normal(kx, (N, c_in), jnp.float32)
    w1, b1 = init_linear_params(k1, c_in, c_hidden)
    w2, b2 = init_linear_params(k2, c_hidden, c_out)

    out = mlp_forward(x, w1, b1, w2, b2)
    out = jax.block_until_ready(out)
    ref = _reference(x, w1, b1, w2, b2)
    assert out.shape == (N, c_out)
    assert jnp.allclose(out, ref, atol=1e-2, rtol=1e-2)

    # Second (still small) case exercising the multi-step row grid + row padding.
    N2 = 40
    x2 = jax.random.normal(jax.random.PRNGKey(1), (N2, c_in), jnp.float32)
    out2 = jax.block_until_ready(mlp_forward(x2, w1, b1, w2, b2, tm=16))
    ref2 = _reference(x2, w1, b1, w2, b2)
    assert out2.shape == (N2, c_out)
    assert jnp.allclose(out2, ref2, atol=1e-2, rtol=1e-2)

    print("KERNEL_OK")
</pallas_src>

<mosaic_0001>
module attributes {stable_mosaic.version = 11 : i64} {
  func.func @mlp_kernel(%arg0: i32, %arg1: memref<16x16xbf16, #tpu.memory_space<vmem>>, %arg2: memref<16x32xbf16, #tpu.memory_space<vmem>>, %arg3: memref<1x32xf32, #tpu.memory_space<vmem>>, %arg4: memref<32x128xbf16, #tpu.memory_space<vmem>>, %arg5: memref<1x128xf32, #tpu.memory_space<vmem>>, %arg6: memref<16x128xf32, #tpu.memory_space<vmem>>) attributes {dimension_semantics = [#tpu.dimension_semantics<parallel>], iteration_bounds = array<i64: 1>, scalar_prefetch = 0 : i64, scratch_operands = 0 : i64, tpu.core_type = #tpu.core_type<tc>, window_params = [{transform_indices = @transform_0, window_bounds = array<i64: 16, 16>}, {pipeline_mode = #tpu.pipeline_mode<synchronous>, transform_indices = @transform_1, window_bounds = array<i64: 16, 32>}, {pipeline_mode = #tpu.pipeline_mode<synchronous>, transform_indices = @transform_2, window_bounds = array<i64: 1, 32>}, {pipeline_mode = #tpu.pipeline_mode<synchronous>, transform_indices = @transform_3, window_bounds = array<i64: 32, 128>}, {pipeline_mode = #tpu.pipeline_mode<synchronous>, transform_indices = @transform_4, window_bounds = array<i64: 1, 128>}, {transform_indices = @transform_5, window_bounds = array<i64: 16, 128>}]} {
    %c0 = arith.constant 0 : index
    %c0_0 = arith.constant 0 : index
    %0 = vector.load %arg1[%c0, %c0_0] : memref<16x16xbf16, #tpu.memory_space<vmem>>, vector<16x16xbf16>
    %c0_1 = arith.constant 0 : index
    %c0_2 = arith.constant 0 : index
    %1 = vector.load %arg2[%c0_1, %c0_2] : memref<16x32xbf16, #tpu.memory_space<vmem>>, vector<16x32xbf16>
    %cst = arith.constant dense<0.000000e+00> : vector<16x32xf32>
    %2 = tpu.matmul %0, %1, %cst {dimension_numbers = #tpu.dot_dimension_numbers<[1], [0], [0], [1], [0, 0, 1, 1], [], []>} : vector<16x16xbf16>, vector<16x32xbf16>, vector<16x32xf32> -> vector<16x32xf32>
    %c0_3 = arith.constant 0 : index
    %c0_4 = arith.constant 0 : index
    %3 = vector.load %arg3[%c0_3, %c0_4] : memref<1x32xf32, #tpu.memory_space<vmem>>, vector<1x32xf32>
    %4 = vector.broadcast %3 : vector<1x32xf32> to vector<16x32xf32>
    %5 = arith.addf %2, %4 : vector<16x32xf32>
    %cst_5 = arith.constant 0.000000e+00 : f32
    %6 = vector.broadcast %cst_5 : f32 to vector<16x32xf32>
    %7 = arith.maximumf %5, %6 : vector<16x32xf32>
    %8 = arith.truncf %7 : vector<16x32xf32> to vector<16x32xbf16>
    %c0_6 = arith.constant 0 : index
    %c0_7 = arith.constant 0 : index
    %9 = vector.load %arg4[%c0_6, %c0_7] : memref<32x128xbf16, #tpu.memory_space<vmem>>, vector<32x128xbf16>
    %cst_8 = arith.constant dense<0.000000e+00> : vector<16x128xf32>
    %10 = tpu.matmul %8, %9, %cst_8 {dimension_numbers = #tpu.dot_dimension_numbers<[1], [0], [0], [1], [0, 0, 1, 1], [], []>} : vector<16x32xbf16>, vector<32x128xbf16>, vector<16x128xf32> -> vector<16x128xf32>
    %c0_9 = arith.constant 0 : index
    %c0_10 = arith.constant 0 : index
    %11 = vector.load %arg5[%c0_9, %c0_10] : memref<1x128xf32, #tpu.memory_space<vmem>>, vector<1x128xf32>
    %12 = vector.broadcast %11 : vector<1x128xf32> to vector<16x128xf32>
    %13 = arith.addf %10, %12 : vector<16x128xf32>
    %c0_11 = arith.constant 0 : index
    %c0_12 = arith.constant 0 : index
    %14 = vector.load %arg6[%c0_11, %c0_12] : memref<16x128xf32, #tpu.memory_space<vmem>>, vector<16x128xf32>
    tpu.vector_store %arg6[%c0_11, %c0_12], %13 {strides = array<i32>} : memref<16x128xf32, #tpu.memory_space<vmem>>, vector<16x128xf32>,
    return
  }
  func.func @transform_0(%arg0: i32) -> (i32, i32) {
    %c0_i32 = arith.constant 0 : i32
    %c0_i32_0 = arith.constant 0 : i32
    return %arg0, %c0_i32 : i32, i32
  }
  func.func @transform_1(%arg0: i32) -> (i32, i32) {
    %c0_i32 = arith.constant 0 : i32
    %c0_i32_0 = arith.constant 0 : i32
    %c0_i32_1 = arith.constant 0 : i32
    return %c0_i32, %c0_i32_0 : i32, i32
  }
  func.func @transform_2(%arg0: i32) -> (i32, i32) {
    %c0_i32 = arith.constant 0 : i32
    %c0_i32_0 = arith.constant 0 : i32
    %c0_i32_1 = arith.constant 0 : i32
    return %c0_i32, %c0_i32_0 : i32, i32
  }
  func.func @transform_3(%arg0: i32) -> (i32, i32) {
    %c0_i32 = arith.constant 0 : i32
    %c0_i32_0 = arith.constant 0 : i32
    %c0_i32_1 = arith.constant 0 : i32
    return %c0_i32, %c0_i32_0 : i32, i32
  }
  func.func @transform_4(%arg0: i32) -> (i32, i32) {
    %c0_i32 = arith.constant 0 : i32
    %c0_i32_0 = arith.constant 0 : i32
    %c0_i32_1 = arith.constant 0 : i32
    return %c0_i32, %c0_i32_0 : i32, i32
  }
  func.func @transform_5(%arg0: i32) -> (i32, i32) {
    %c0_i32 = arith.constant 0 : i32
    %c0_i32_0 = arith.constant 0 : i32
    return %arg0, %c0_i32 : i32, i32
  }
}

</mosaic_0001>

<llo_original>
// kernel: tpu_custom_call.1
$region0: #{tpu_custom_call.1}
  #allocation0 [shape = 'u32[]', space=smem, size = 0x4, offset = 0x4, fixed_abs, tag = 'smem constant byte address 0x4 - core index']
  #allocation1 [shape = 'u32[72,128]{1,0:T(1,128)}', space=vmem, size = 0x9000, scoped, tag = 'internal scratch']
  %s0 = inlined_call_operand.hbm [shape: bf16[16,16], index: 0, kind: input, shape index: {}]
  %s1 = inlined_call_operand.hbm [shape: bf16[16,32], index: 1, kind: input, shape index: {}]
  %s2 = inlined_call_operand.vmem [shape: f32[1,32], index: 2, kind: input, shape index: {}]
  %s3 = inlined_call_operand.hbm [shape: bf16[32,128], index: 3, kind: input, shape index: {}]
  %s4 = inlined_call_operand.vmem [shape: f32[1,128], index: 4, kind: input, shape index: {}]
  %s5 = inlined_call_operand.hbm [shape: f32[16,128], index: 5, kind: output, shape index: {}]
  %s6 = sld [smem:[#allocation0]]
  $region42: #{tpu_custom_call.1} parent=0
    _
  %s8 = ssub.s32 1, %s6
  %s9 = scalar_select 0, %s8, %s6
  $region1: #{tpu_custom_call.1} parent=0
    #allocation2 [shape = 'u8[4096]{0}', space=vmem, size = 0x1000, scoped, tag = 'input window, operand 0, single buffered']
    #allocation3 [shape = 's32[1]{0}', space=sflag, size = 0x4, scoped, tag = 'scoped memory for tpu_custom_call.1']
    #allocation4 [shape = 's32[1]{0}', space=sflag, size = 0x4, scoped, tag = 'scoped memory for tpu_custom_call.1']
    #allocation5 [shape = 'u8[4096]{0}', space=vmem, size = 0x1000, scoped, tag = 'input window, operand 1, single buffered']
    #allocation6 [shape = 's32[1]{0}', space=sflag, size = 0x4, scoped, tag = 'scoped memory for tpu_custom_call.1']
    #allocation7 [shape = 'u8[8192]{0}', space=vmem, size = 0x2000, scoped, tag = 'input window, operand 3, single buffered']
    #allocation8 [shape = 'u8[8192]{0}', space=vmem, size = 0x2000, scoped, tag = 'output window, operand 0, single buffered']
    %10 = vsyncpa [#allocation3], 0
    %11 = vsyncpa [#allocation6], 0
    %12 = vsyncpa [#allocation4], 0
    // Predicated region
    $region2: #{tpu_custom_call.1} parent=1 // pred_check
      _
    $region3: #{tpu_custom_call.1} parent=1 // pred_check_branch
      %14 = sbr.rel (0) target = $region5
    $region4: #{tpu_custom_call.1} parent=1 // pred_region
      %16 = vsyncadd [#allocation3], 0
      %s17 = sshll.u32 %s0, 4
      %s18 = int_to_ptr.hbm [resolvable:$true] %s17
      %s19 = sshll.u32 [#allocation2], 4
      %s20 = int_to_ptr.vmem [resolvable:$true] %s19
      %25 = dma.hbm_to_vmem [thread:$0]  %s18, 128, %s20, [#allocation3], 64, 64, 4
    $region5: #{tpu_custom_call.1} parent=1 // pred_fallthru
      _
    // Predicated region
    $region6: #{tpu_custom_call.1} parent=1 // pred_check
      _
    $region7: #{tpu_custom_call.1} parent=1 // pred_check_branch
      %27 = sbr.rel (0) target = $region9
    $region8: #{tpu_custom_call.1} parent=1 // pred_region
      %29 = vsyncadd [#allocation6], 0
      %s30 = sshll.u32 %s1, 4
      %s31 = int_to_ptr.hbm [resolvable:$true] %s30
      %s32 = sshll.u32 [#allocation5], 4
      %s33 = int_to_ptr.vmem [resolvable:$true] %s32
      %38 = dma.hbm_to_vmem [thread:$0]  %s31, 128, %s33, [#allocation6], 64, 64, 4
    $region9: #{tpu_custom_call.1} parent=1 // pred_fallthru
      _
    // Predicated region
    $region10: #{tpu_custom_call.1} parent=1 // pred_check
      _
    $region11: #{tpu_custom_call.1} parent=1 // pred_check_branch
      %40 = sbr.rel (0) target = $region13
    $region12: #{tpu_custom_call.1} parent=1 // pred_region
      _
    $region13: #{tpu_custom_call.1} parent=1 // pred_fallthru
      _
    // Predicated region
    $region14: #{tpu_custom_call.1} parent=1 // pred_check
      _
    $region15: #{tpu_custom_call.1} parent=1 // pred_check_branch
      %42 = sbr.rel (0) target = $region17
    $region16: #{tpu_custom_call.1} parent=1 // pred_region
      %44 = vsyncadd [#allocation6], 0
      %s45 = sshll.u32 %s3, 4
      %s46 = int_to_ptr.hbm [resolvable:$true] %s45
      %s47 = sshll.u32 [#allocation7], 4
      %s48 = int_to_ptr.vmem [resolvable:$true] %s47
      %53 = dma.hbm_to_vmem [thread:$0]  %s46, 256, %s48, [#allocation6], 64, 64, 4
    $region17: #{tpu_custom_call.1} parent=1 // pred_fallthru
      _
    // Predicated region
    $region18: #{tpu_custom_call.1} parent=1 // pred_check
      _
    $region19: #{tpu_custom_call.1} parent=1 // pred_check_branch
      %55 = sbr.rel (0) target = $region21
    $region20: #{tpu_custom_call.1} parent=1 // pred_region
      _
    $region21: #{tpu_custom_call.1} parent=1 // pred_fallthru
      _
    // Predicated region
    $region22: #{tpu_custom_call.1} parent=1 // pred_check
      _
    $region23: #{tpu_custom_call.1} parent=1 // pred_check_branch
      %57 = sbr.rel (0) target = $region25
    $region24: #{tpu_custom_call.1} parent=1 // pred_region
      %59 = dma.done [#allocation3], 128
    $region25: #{tpu_custom_call.1} parent=1 // pred_fallthru
      _
    // Predicated region
    $region26: #{tpu_custom_call.1} parent=1 // pred_check
      _
    $region27: #{tpu_custom_call.1} parent=1 // pred_check_branch
      %61 = sbr.rel (0) target = $region29
    $region28: #{tpu_custom_call.1} parent=1 // pred_region
      %63 = dma.done [#allocation6], 128
    $region29: #{tpu_custom_call.1} parent=1 // pred_fallthru
      _
    // Predicated region
    $region30: #{tpu_custom_call.1} parent=1 // pred_check
      _
    $region31: #{tpu_custom_call.1} parent=1 // pred_check_branch
      %65 = sbr.rel (0) target = $region33
    $region32: #{tpu_custom_call.1} parent=1 // pred_region
      %67 = dma.done [#allocation6], 256
    $region33: #{tpu_custom_call.1} parent=1 // pred_fallthru
      _
    %v69 = vld [vmem:[#allocation2] sm:$0xf]
    %v70 = vld [vmem:[#allocation2 + $0x4] sm:$0xf]
    %v71 = vld [vmem:[#allocation5] sm:$0xf]
    %v72 = vld [vmem:[#allocation5 + $0x4] sm:$0xf]
    %v73 = vld [vmem:[%s2] sm:$0x1]
    %v75 = vperm.slane %v73, 0
    %v79 = vunpack.c.l.b16 %v69
    %v80 = vunpack.c.l.b16 %v70
    %v81 = vpack.c.b16 %v80, %v79
    %v84 = vunpack.c.l.b16 %v71
    %v85 = vunpack.c.l.b16 %v72
    %v86 = vpack.c.b16 %v85, %v84
    %vm88 = vcmask 130048
    %v90 = vsel %vm88, %v81, 0
    %92 = vmatpush.bf16.msra.mxu0 0
    %93 = vmatpush.bf16.msra.mxu0 0
    %94 = vmatpush.bf16.msra.mxu0 0
    %95 = vmatpush.bf16.msra.mxu0 0
    %96 = vmatpush.bf16.msra.mxu0 0
    %97 = vmatpush.bf16.msra.mxu0 0
    %98 = vmatpush.bf16.msra.mxu0 0
    %99 = vmatpush.bf16.msra.mxu0 %v86
    %100 = vmatmul.bf16.gmra.mxu0 %v90
    %v101 = vpop.f32.mrf.mxu0
    %v102 = vadd.f32 %v75, %v101
    %v103 = vpop.f32.mrf.mxu0
    %v104 = vadd.f32 %v75, %v103
    %105 = vdwg.mxu0
    %v106 = vmax.f32 %v102, 0.0
    %v107 = vmax.f32 %v104, 0.0
    %v108 = vpack.c.bf16 %v107, %v106
    %v109 = vld [vmem:[#allocation7] sm:$0xf]
    %v110 = vld [vmem:[#allocation7 + $0x4] sm:$0xf]
    %v111 = vld [vmem:[#allocation7 + $0x8] sm:$0xf]
    %v112 = vld [vmem:[#allocation7 + $0xc] sm:$0xf]
    %v113 = vld [vmem:[%s4] sm:$0x1]
    %v115 = vperm.slane %v113, 0
    %v121 = vunpack.c.l.b16 %v109
    %v122 = vunpack.c.l.b16 %v110
    %v123 = vunpack.c.l.b16 %v111
    %v124 = vunpack.c.l.b16 %v112
    %v125 = vpack.c.b16 %v122, %v121
    %v126 = vpack.c.b16 %v124, %v123
    %vm129 = vcmask 261120
    %v131 = vsel %vm129, %v108, 0
    %133 = vmatpush.bf16.msra.mxu0 0
    %134 = vmatpush.bf16.msra.mxu0 0
    %135 = vmatpush.bf16.msra.mxu0 0
    %136 = vmatpush.bf16.msra.mxu0 0
    %137 = vmatpush.bf16.msra.mxu0 0
    %138 = vmatpush.bf16.msra.mxu0 0
    %139 = vmatpush.bf16.msra.mxu0 %v126
    %140 = vmatpush.bf16.msra.mxu0 %v125
    %141 = vmatmul.bf16.gmra.mxu0 %v131
    %v142 = vpop.f32.mrf.mxu0
    %v143 = vadd.f32 %v115, %v142
    %v144 = vpop.f32.mrf.mxu0
    %v145 = vadd.f32 %v115, %v144
    %146 = vdwg.mxu0
    %147 = vst [vmem:[#allocation8] sm:$0xff] %v143
    %148 = vst [vmem:[#allocation8 + $0x8] sm:$0xff] %v145
    // Predicated region
    $region34: #{tpu_custom_call.1} parent=1 // pred_check
      _
    $region35: #{tpu_custom_call.1} parent=1 // pred_check_branch
      %150 = sbr.rel (0) target = $region37
    $region36: #{tpu_custom_call.1} parent=1 // pred_region
      %152 = vsyncadd [#allocation4], 0
      %s153 = sshll.u32 [#allocation8], 4
      %s154 = int_to_ptr.vmem [resolvable:$true] %s153
      %s155 = sshll.u32 %s5, 4
      %s156 = int_to_ptr.hbm [resolvable:$true] %s155
      %161 = dma.vmem_to_hbm [thread:$0]  %s154, 256, %s156, [#allocation4], 128, 128, 8
    $region37: #{tpu_custom_call.1} parent=1 // pred_fallthru
      _
    // Predicated region
    $region38: #{tpu_custom_call.1} parent=1 // pred_check
      _
    $region39: #{tpu_custom_call.1} parent=1 // pred_check_branch
      %163 = sbr.rel (0) target = $region41
    $region40: #{tpu_custom_call.1} parent=1 // pred_region
      %165 = dma.done [#allocation4], 256
    $region41: #{tpu_custom_call.1} parent=1 // pred_fallthru
      _
    %166 = vsyncpa [#allocation3], 1
    %167 = vsyncpa [#allocation6], 1
    %168 = vsyncpa [#allocation4], 1

</llo_original>
